<compile_context>
chip_gen: v5e
topology: v5e:2x2
jax: 0.10.0
libtpu: 0.0.40
codegen_flags: <defaults>
</compile_context>

<pallas_src>
import functools

import jax
import jax.numpy as jnp
from jax import lax
from jax.experimental import pallas as pl
from jax.experimental.pallas import tpu as pltpu


def _scale_predictor_kernel(x_ref, wt_ref, bt_ref, o_ref, *, half_span, mid):
    # (8, tm) = (8, C) . (tm, C)^T  -- contraction on the last dim of both
    # operands (same dimension_numbers as q @ k^T in flash attention), so the
    # big x tile streams through the MXU's native transposed-weight path and
    # the result comes out lane-dense (rows on the 128-wide lane axis).
    acc_t = lax.dot_general(
        wt_ref[...], x_ref[...],
        dimension_numbers=(((1,), (1,)), ((), ())),
        preferred_element_type=jnp.float32)            # (8, tm) f32
    y = acc_t + bt_ref[...]                            # (8, 1) lane-broadcast
    # sigmoid(y)*max_a + min_a == 0.5*max_a*tanh(y/2) + (0.5*max_a + min_a):
    # one EUP transcendental per dense (8, tm) vreg; all math in f32.
    scale = half_span * jnp.tanh(0.5 * y) + mid
    o_ref[...] = scale[:3, :].astype(o_ref.dtype)      # (3, tm) lane-dense store


def _round_up(x, m):
    return ((x + m - 1) // m) * m


def _default_row_tile(rows, in_channels, x_itemsize):
    """Pick a big, VMEM-safe, lane-aligned row tile."""
    # Small inputs: one full block (block_shape == array shape is always legal
    # and avoids any padding/masking).
    if rows <= 2048:
        return rows
    # Target ~4 MiB of x per tile so per-step DMA dominates the ~0.35 us
    # grid-step overhead on every generation (v5e 0.8 TB/s ... v7x 3.2 TB/s).
    budget_bytes = 4 * 1024 * 1024
    tm = budget_bytes // max(1, in_channels * x_itemsize)
    tm = max(1024, min(16384, tm))
    tm = (tm // 128) * 128                 # lane-aligned; covers bf16/int8 sublane packing
    # Keep at least 2 row blocks so both v7x TensorCores get work.
    if pl.cdiv(rows, tm) < 2:
        tm = max(128, _round_up(pl.cdiv(rows, 2), 128))
    return tm


def scale_predictor_forward(x, weight, bias, *, min_a=0.05, max_a=10.0,
                            tm=None, channel_major_out=False):
    """x: [..., C]; weight: [C, 3]; bias: [3].

    Returns sigmoid(x @ weight + bias) * max_a + min_a with trailing dim 3,
    or (if channel_major_out) the kernel's native lane-dense layout
    (3, *x.shape[:-1]) with no trailing transpose.
    """
    orig_shape = x.shape
    in_channels = orig_shape[-1]
    x2d = x.reshape(-1, in_channels)          # native dtype: no extra HBM pass
    rows = x2d.shape[0]

    if tm is None:
        tm = _default_row_tile(rows, in_channels, x2d.dtype.itemsize)
    tm = int(min(tm, rows))
    if tm <= 0 or (tm != rows and tm % 128 != 0):
        raise ValueError(
            f"row tile tm={tm} must equal the row count or be a positive "
            "multiple of 128 (lane-dense output blocks)")

    # Weight transposed and zero-padded to a full (8, C) sublane tile; bias as
    # an (8, 1) f32 column (lane-broadcast in-kernel).  The weight is cast to
    # x's dtype so the MXU runs its fast path; accumulation stays f32.
    # (For bf16 x this rounds w to ~2^-9 relative; keep x in f32 if the
    # downstream scale values are precision-sensitive.)
    wt = jnp.zeros((8, in_channels), x2d.dtype).at[:3, :].set(
        weight.T.astype(x2d.dtype))
    bt = jnp.zeros((8, 1), jnp.float32).at[:3, 0].set(bias.astype(jnp.float32))

    kernel = functools.partial(
        _scale_predictor_kernel,
        half_span=0.5 * float(max_a),
        mid=0.5 * float(max_a) + float(min_a))

    # Real double-buffered VMEM footprint: x tile + (3, tm) out tile padded to
    # 8 sublanes (NOT lane-padded to 128 anymore).  Pass an explicit limit so
    # large tiles also compile under v5e's 16 MiB scoped-VMEM default.
    x_tile_bytes = tm * in_channels * x2d.dtype.itemsize
    out_tile_bytes = 8 * tm * x2d.dtype.itemsize
    est = 2 * (x_tile_bytes + out_tile_bytes) + 8 * in_channels * 4 + 4096
    vmem_limit = int(min(max(2 * est, 16 * 1024 * 1024), 32 * 1024 * 1024))

    grid = (pl.cdiv(rows, tm),)               # partial last block: Pallas clips
    out_t = pl.pallas_call(
        kernel,
        out_shape=jax.ShapeDtypeStruct((3, rows), x2d.dtype),
        grid_spec=pltpu.PrefetchScalarGridSpec(
            num_scalar_prefetch=0,
            grid=grid,
            in_specs=[
                pl.BlockSpec((tm, in_channels), lambda i: (i, 0)),   # streamed x
                pl.BlockSpec((8, in_channels), lambda i: (0, 0)),    # resident w^T
                pl.BlockSpec((8, 1), lambda i: (0, 0)),              # resident bias
            ],
            out_specs=pl.BlockSpec((3, tm), lambda i: (0, i)),       # lane-dense
        ),
        compiler_params=pltpu.CompilerParams(
            dimension_semantics=("parallel",),
            vmem_limit_bytes=vmem_limit),
    )(x2d, wt, bt)

    if channel_major_out:
        return out_t.reshape(3, *orig_shape[:-1])
    # Trailing transpose of the tiny (3, rows) result (12 B/row) back to (...,3).
    return out_t.T.reshape(*orig_shape[:-1], 3)


def init_params(in_channels, key):
    """Deterministic init mimicking nn.Linear default (uniform +/- 1/sqrt(fan_in))."""
    kw, kb = jax.random.split(key)
    bound = 1.0 / jnp.sqrt(in_channels)
    weight = jax.random.uniform(kw, (in_channels, 3), jnp.float32, -bound, bound)
    bias = jax.random.uniform(kb, (3,), jnp.float32, -bound, bound)
    return weight, bias


if __name__ == "__main__":
    key = jax.random.PRNGKey(0)
    kx, kp, kx2 = jax.random.split(key, 3)

    # Shapes as used inside Nerflet: z_shape embeddings (M=16, dim_latent=128),
    # scale range scale_min=0.05, scale_max=2.
    M, dim_latent = 16, 128
    x = jax.random.normal(kx, (M, dim_latent), jnp.float32)
    weight, bias = init_params(dim_latent, kp)

    out = scale_predictor_forward(x, weight, bias, min_a=0.05, max_a=2.0)
    out = jax.block_until_ready(out)
    ref = jax.nn.sigmoid(x @ weight + bias) * 2.0 + 0.05
    assert out.shape == (M, 3)
    assert jnp.allclose(out, ref, atol=3e-5, rtol=3e-5)

    # Multi-block grid (grid=3) with a partial trailing block and flattened
    # leading batch dims; exercises the lane-dense (3, tm) output blocks.
    x2 = jax.random.normal(kx2, (2, 300, 64), jnp.float32)
    w2, b2 = init_params(64, kp)
    out2 = scale_predictor_forward(x2, w2, b2, min_a=0.05, max_a=2.0, tm=256)
    out2 = jax.block_until_ready(out2)
    ref2 = jax.nn.sigmoid(x2 @ w2 + b2) * 2.0 + 0.05
    assert out2.shape == (2, 300, 3)
    assert jnp.allclose(out2, ref2, atol=3e-5, rtol=3e-5)

    # Channel-major output path (no trailing transpose).
    out2_cm = scale_predictor_forward(x2, w2, b2, min_a=0.05, max_a=2.0,
                                      tm=256, channel_major_out=True)
    out2_cm = jax.block_until_ready(out2_cm)
    assert out2_cm.shape == (3, 2, 300)
    assert jnp.allclose(out2_cm, jnp.moveaxis(ref2, -1, 0), atol=3e-5, rtol=3e-5)

    # bf16 streaming path: halves HBM read bytes; the MXU still accumulates in
    # f32 and the tanh/affine epilogue runs in f32.
    x_bf16 = x.astype(jnp.bfloat16)
    out_bf16 = scale_predictor_forward(x_bf16, weight, bias,
                                       min_a=0.05, max_a=2.0)
    out_bf16 = jax.block_until_ready(out_bf16)
    assert out_bf16.shape == (M, 3)
    assert jnp.allclose(out_bf16.astype(jnp.float32), ref, atol=5e-2)

    print("KERNEL_OK")
</pallas_src>

<mosaic_0001>
module attributes {stable_mosaic.version = 11 : i64} {
  func.func @_scale_predictor_kernel(%arg0: i32, %arg1: memref<16x128xf32, #tpu.memory_space<vmem>>, %arg2: memref<8x128xf32, #tpu.memory_space<vmem>>, %arg3: memref<8x1xf32, #tpu.memory_space<vmem>>, %arg4: memref<3x16xf32, #tpu.memory_space<vmem>>) attributes {dimension_semantics = [#tpu.dimension_semantics<parallel>], iteration_bounds = array<i64: 1>, scalar_prefetch = 0 : i64, scratch_operands = 0 : i64, tpu.core_type = #tpu.core_type<tc>, window_params = [{transform_indices = @transform_0, window_bounds = array<i64: 16, 128>}, {pipeline_mode = #tpu.pipeline_mode<synchronous>, transform_indices = @transform_1, window_bounds = array<i64: 8, 128>}, {pipeline_mode = #tpu.pipeline_mode<synchronous>, transform_indices = @transform_2, window_bounds = array<i64: 8, 1>}, {transform_indices = @transform_3, window_bounds = array<i64: 3, 16>}]} {
    %c0 = arith.constant 0 : index
    %c0_0 = arith.constant 0 : index
    %0 = vector.load %arg2[%c0, %c0_0] : memref<8x128xf32, #tpu.memory_space<vmem>>, vector<8x128xf32>
    %c0_1 = arith.constant 0 : index
    %c0_2 = arith.constant 0 : index
    %1 = vector.load %arg1[%c0_1, %c0_2] : memref<16x128xf32, #tpu.memory_space<vmem>>, vector<16x128xf32>
    %cst = arith.constant dense<0.000000e+00> : vector<8x16xf32>
    %2 = tpu.matmul %0, %1, %cst {dimension_numbers = #tpu.dot_dimension_numbers<[1], [1], [0], [0], [0, 0, 1, 0], [], []>} : vector<8x128xf32>, vector<16x128xf32>, vector<8x16xf32> -> vector<8x16xf32>
    %c0_3 = arith.constant 0 : index
    %c0_4 = arith.constant 0 : index
    %3 = vector.load %arg3[%c0_3, %c0_4] : memref<8x1xf32, #tpu.memory_space<vmem>>, vector<8x1xf32>
    %4 = vector.broadcast %3 : vector<8x1xf32> to vector<8x16xf32>
    %5 = arith.addf %2, %4 : vector<8x16xf32>
    %cst_5 = arith.constant 5.000000e-01 : f32
    %6 = vector.broadcast %cst_5 : f32 to vector<8x16xf32>
    %7 = arith.mulf %6, %5 : vector<8x16xf32>
    %8 = math.tanh %7 : vector<8x16xf32>
    %cst_6 = arith.constant 1.000000e+00 : f32
    %9 = vector.broadcast %cst_6 : f32 to vector<8x16xf32>
    %10 = arith.mulf %9, %8 : vector<8x16xf32>
    %cst_7 = arith.constant 1.050000e+00 : f32
    %11 = vector.broadcast %cst_7 : f32 to vector<8x16xf32>
    %12 = arith.addf %10, %11 : vector<8x16xf32>
    %13 = vector.extract_strided_slice %12 {offsets = [0, 0], sizes = [3, 16], strides = [1, 1]} : vector<8x16xf32> to vector<3x16xf32>
    %c0_8 = arith.constant 0 : index
    %c0_9 = arith.constant 0 : index
    %14 = vector.load %arg4[%c0_8, %c0_9] : memref<3x16xf32, #tpu.memory_space<vmem>>, vector<3x16xf32>
    tpu.vector_store %arg4[%c0_8, %c0_9], %13 {strides = array<i32>} : memref<3x16xf32, #tpu.memory_space<vmem>>, vector<3x16xf32>,
    return
  }
  func.func @transform_0(%arg0: i32) -> (i32, i32) {
    %c0_i32 = arith.constant 0 : i32
    %c0_i32_0 = arith.constant 0 : i32
    return %arg0, %c0_i32 : i32, i32
  }
  func.func @transform_1(%arg0: i32) -> (i32, i32) {
    %c0_i32 = arith.constant 0 : i32
    %c0_i32_0 = arith.constant 0 : i32
    %c0_i32_1 = arith.constant 0 : i32
    return %c0_i32, %c0_i32_0 : i32, i32
  }
  func.func @transform_2(%arg0: i32) -> (i32, i32) {
    %c0_i32 = arith.constant 0 : i32
    %c0_i32_0 = arith.constant 0 : i32
    %c0_i32_1 = arith.constant 0 : i32
    return %c0_i32, %c0_i32_0 : i32, i32
  }
  func.func @transform_3(%arg0: i32) -> (i32, i32) {
    %c0_i32 = arith.constant 0 : i32
    %c0_i32_0 = arith.constant 0 : i32
    return %c0_i32, %arg0 : i32, i32
  }
}

</mosaic_0001>

<llo_original>
// kernel: tpu_custom_call.1
$region0: #{tpu_custom_call.1}
  #allocation0 [shape = 'u32[]', space=smem, size = 0x4, offset = 0x4, fixed_abs, tag = 'smem constant byte address 0x4 - core index']
  #allocation1 [shape = 'u32[72,128]{1,0:T(1,128)}', space=vmem, size = 0x9000, scoped, tag = 'internal scratch']
  %s0 = inlined_call_operand.hbm [shape: f32[16,128], index: 0, kind: input, shape index: {}]
  %s1 = inlined_call_operand.vmem [shape: f32[8,128], index: 1, kind: input, shape index: {}]
  %s2 = inlined_call_operand.vmem [shape: f32[8,1], index: 2, kind: input, shape index: {}]
  %s3 = inlined_call_operand.hbm [shape: f32[3,16], index: 3, kind: output, shape index: {}]
  %s4 = sld [smem:[#allocation0]]
  $region26: #{tpu_custom_call.1} parent=0
    _
  %s6 = ssub.s32 1, %s4
  %s7 = scalar_select 0, %s6, %s4
  $region1: #{tpu_custom_call.1} parent=0
    #allocation2 [shape = 'u8[8192]{0}', space=vmem, size = 0x2000, scoped, tag = 'input window, operand 0, single buffered']
    #allocation3 [shape = 's32[1]{0}', space=sflag, size = 0x4, scoped, tag = 'scoped memory for tpu_custom_call.1']
    #allocation4 [shape = 's32[1]{0}', space=sflag, size = 0x4, scoped, tag = 'scoped memory for tpu_custom_call.1']
    #allocation5 [shape = 'u8[2048]{0}', space=vmem, size = 0x800, scoped, tag = 'output window, operand 0, single buffered']
    %8 = vsyncpa [#allocation3], 0
    %9 = vsyncpa [#allocation4], 0
    // Predicated region
    $region2: #{tpu_custom_call.1} parent=1 // pred_check
      _
    $region3: #{tpu_custom_call.1} parent=1 // pred_check_branch
      %11 = sbr.rel (0) target = $region5
    $region4: #{tpu_custom_call.1} parent=1 // pred_region
      %13 = vsyncadd [#allocation3], 0
      %s14 = sshll.u32 %s0, 4
      %s15 = int_to_ptr.hbm [resolvable:$true] %s14
      %s16 = sshll.u32 [#allocation2], 4
      %s17 = int_to_ptr.vmem [resolvable:$true] %s16
      %22 = dma.hbm_to_vmem [thread:$0]  %s15, 256, %s17, [#allocation3], 128, 128, 8
    $region5: #{tpu_custom_call.1} parent=1 // pred_fallthru
      _
    // Predicated region
    $region6: #{tpu_custom_call.1} parent=1 // pred_check
      _
    $region7: #{tpu_custom_call.1} parent=1 // pred_check_branch
      %24 = sbr.rel (0) target = $region9
    $region8: #{tpu_custom_call.1} parent=1 // pred_region
      _
    $region9: #{tpu_custom_call.1} parent=1 // pred_fallthru
      _
    // Predicated region
    $region10: #{tpu_custom_call.1} parent=1 // pred_check
      _
    $region11: #{tpu_custom_call.1} parent=1 // pred_check_branch
      %26 = sbr.rel (0) target = $region13
    $region12: #{tpu_custom_call.1} parent=1 // pred_region
      _
    $region13: #{tpu_custom_call.1} parent=1 // pred_fallthru
      _
    // Predicated region
    $region14: #{tpu_custom_call.1} parent=1 // pred_check
      _
    $region15: #{tpu_custom_call.1} parent=1 // pred_check_branch
      %28 = sbr.rel (0) target = $region17
    $region16: #{tpu_custom_call.1} parent=1 // pred_region
      %30 = dma.done [#allocation3], 256
    $region17: #{tpu_custom_call.1} parent=1 // pred_fallthru
      _
    %v31 = vld [vmem:[%s1] sm:$0xff]
    %v32 = vld [vmem:[#allocation2] sm:$0xff]
    %v33 = vld [vmem:[#allocation2 + $0x8] sm:$0xff]
    %v34 = vld [vmem:[%s2] sm:$0xff]
    %36 = vset.pattern.permute.xlu0 0
    %37 = vperm.xlu0 %36, %v34
    %v38 = vpop.permute.xlu0 %37
    %40 = vmatpush.xpose.msra.mxu0 0.0
    %41 = vmatpush.xpose.msra.mxu0 0.0
    %42 = vmatpush.xpose.msra.mxu0 0.0
    %43 = vmatpush.xpose.msra.mxu0 0.0
    %44 = vmatpush.xpose.msra.mxu0 0.0
    %45 = vmatpush.xpose.msra.mxu0 0.0
    %46 = vmatpush.xpose.msra.mxu0 0.0
    %47 = vmatpush.xpose.msra.mxu0 0.0
    %48 = vmatpush.xpose.msra.mxu0 0.0
    %49 = vmatpush.xpose.msra.mxu0 0.0
    %50 = vmatpush.xpose.msra.mxu0 0.0
    %51 = vmatpush.xpose.msra.mxu0 0.0
    %52 = vmatpush.xpose.msra.mxu0 0.0
    %53 = vmatpush.xpose.msra.mxu0 0.0
    %54 = vmatpush.xpose.msra.mxu0 %v33
    %55 = vmatpush.xpose.msra.mxu0 %v32
    %56 = vmatmul.f32.gmra.mxu0 %v31
    %v57 = vpop.f32.mrf.mxu0
    %v58 = vadd.f32 %v38, %v57
    %59 = vdwg.mxu0
    %v60 = vmul.f32 %v58, 0.5
    %v61 = vtanh.pop %v60
    %v62 = vadd.f32 %v61, 1.05
    %vm63 = vcmask 124928
    %64 = vst.msk [vmem:[#allocation5] sm:$0x7] %vm63, %v62
    // Predicated region
    $region18: #{tpu_custom_call.1} parent=1 // pred_check
      _
    $region19: #{tpu_custom_call.1} parent=1 // pred_check_branch
      %66 = sbr.rel (0) target = $region21
    $region20: #{tpu_custom_call.1} parent=1 // pred_region
      %68 = vsyncadd [#allocation4], 0
      %s70 = sshll.u32 [#allocation5], 4
      %s71 = int_to_ptr.vmem [resolvable:$true] %s70
      %s72 = sshll.u32 %s3, 4
      %s73 = int_to_ptr.hbm [resolvable:$true] %s72
      %75 = dma.vmem_to_hbm [thread:$0]  %s71, 64, %s73, [#allocation4]
    $region21: #{tpu_custom_call.1} parent=1 // pred_fallthru
      _
    // Predicated region
    $region22: #{tpu_custom_call.1} parent=1 // pred_check
      _
    $region23: #{tpu_custom_call.1} parent=1 // pred_check_branch
      %77 = sbr.rel (0) target = $region25
    $region24: #{tpu_custom_call.1} parent=1 // pred_region
      %79 = dma.done [#allocation4], 64
    $region25: #{tpu_custom_call.1} parent=1 // pred_fallthru
      _
    %80 = vsyncpa [#allocation3], 1
    %81 = vsyncpa [#allocation4], 1

</llo_original>
